<compile_context>
chip_gen: v7x
topology: tpu7x:2x2x1
jax: 0.10.0
libtpu: 0.0.40
codegen_flags: <defaults>
</compile_context>

<pallas_src>
import functools

import jax
import jax.numpy as jnp
from jax.experimental import pallas as pl
from jax.experimental.pallas import tpu as pltpu

HIDDEN = 128          # nn.Linear(input_size, 128); already lane-aligned
LANE = 128            # TPU lane width
TB_MAX = 512          # max batch-tile rows (keeps 2x-buffered tiles small)
NEG_INF = -1e30       # bias for padded classes -> softmax prob exactly 0


def _round_up(n, m):
    return ((n + m - 1) // m) * m


def _pick_tb(batch):
    """Batch-tile rows: big tiles amortize ~0.35us/step overhead; >=2 grid
    steps (when batch > 8) lets v7x shard the parallel axis over its 2 TCs."""
    if batch <= 8:
        return batch                      # one block == full batch (legal)
    tb = _round_up(-(-batch // 2), 8)     # ceil(batch/2), multiple of 8
    return min(TB_MAX, tb)


def _mlp_softmax_kernel(x_ref, w1_ref, b1_ref, w2_ref, b2_ref, out_ref):
    # One (tb, K) batch tile per grid step; weights stay resident in VMEM.
    # bf16 operands into both MXU matmuls, f32 accumulation / elementwise.
    x = x_ref[...].astype(jnp.bfloat16)                         # cast in VPU slot

    h = jnp.dot(x, w1_ref[...], preferred_element_type=jnp.float32) + b1_ref[...]
    h = jnp.maximum(h, 0.0)                                     # ReLU in f32

    logits = jnp.dot(h.astype(jnp.bfloat16), w2_ref[...],
                     preferred_element_type=jnp.float32) + b2_ref[...]

    # Softmax over the lane-dense padded class axis; padded logits are -1e30
    # so exp(..) == 0 and real-class probabilities are exact.
    m = jnp.max(logits, axis=-1, keepdims=True)
    e = jnp.exp(logits - m)
    denom = jnp.sum(e, axis=-1, keepdims=True)
    out_ref[...] = (e * pl.reciprocal(denom, approx=True)).astype(out_ref.dtype)


def _mlp_softmax_pallas(x, w1_p, b1_p, w2_p, b2_p):
    batch, input_size = x.shape
    hidden = w1_p.shape[1]
    n_pad = w2_p.shape[1]
    tb = _pick_tb(batch)
    grid = (pl.cdiv(batch, tb),)

    # Scoped-VMEM budget: 2x-buffered x / out tiles + single-buffered resident
    # weights + f32 intermediates, with 2x headroom; clamped to a range safe on
    # v5e (16 MiB default scoped) and v7x (64 MiB physical).
    tile_bytes = (2 * tb * input_size * 4            # x tiles (f32)
                  + 2 * tb * n_pad * 2               # out tiles (bf16)
                  + 3 * tb * max(hidden, n_pad) * 4)  # f32 h / logits / exp temps
    weight_bytes = (input_size * hidden + hidden * n_pad) * 2 + (hidden + n_pad) * 4
    vmem_limit = int(min(64 << 20, max(32 << 20, 2 * (tile_bytes + weight_bytes))))

    def resident(shape):
        # Constant index_map -> DMA'd once; single buffer saves VMEM.
        return pl.BlockSpec(shape, lambda i: (0, 0), pipeline_mode=pl.Buffered(1))

    return pl.pallas_call(
        _mlp_softmax_kernel,
        out_shape=jax.ShapeDtypeStruct((batch, n_pad), jnp.bfloat16),
        grid=grid,
        in_specs=[
            pl.BlockSpec((tb, input_size), lambda i: (i, 0)),   # x: tiled batch, full K
            resident((input_size, hidden)),                     # W1
            resident((1, hidden)),                              # b1
            resident((hidden, n_pad)),                          # W2
            resident((1, n_pad)),                               # b2
        ],
        out_specs=pl.BlockSpec((tb, n_pad), lambda i: (i, 0)),
        compiler_params=pltpu.CompilerParams(
            dimension_semantics=("parallel",),
            vmem_limit_bytes=vmem_limit,
        ),
    )(x, w1_p, b1_p, w2_p, b2_p)


@functools.partial(jax.jit, static_argnames=("output_size",))
def _forward_probs(x, w1_p, b1_p, w2_p, b2_p, *, output_size):
    probs_pad = _mlp_softmax_pallas(x, w1_p, b1_p, w2_p, b2_p)
    # Padded classes are exactly 0; drop them and return f32 like the PyTorch model.
    return probs_pad[:, :output_size].astype(jnp.float32)


@functools.partial(jax.jit, static_argnames=("output_size",))
def _forward_loss(x, w1_p, b1_p, w2_p, b2_p, labels, *, output_size):
    # TODO(synk): fuse this CE tail into the kernel (labels via scalar prefetch,
    # (tb, 1) per-row loss output) if the training path ever becomes hot.
    probs_pad = _mlp_softmax_pallas(x, w1_p, b1_p, w2_p, b2_p)
    y_pred = probs_pad[:, :output_size].astype(jnp.float32)
    # Faithful to PyTorch: log_softmax applied to the already-softmaxed probs.
    logp = jax.nn.log_softmax(y_pred, axis=1)
    nll = -jnp.take_along_axis(logp, labels[:, None], axis=1)[:, 0]
    return jnp.mean(nll)


def prepare_params(params):
    """Pad / cast weights once (call at init; reuse across forward calls)."""
    w1, b1, w2, b2 = params
    input_size, hidden = w1.shape
    output_size = w2.shape[1]
    n_pad = _round_up(output_size, LANE)

    w1_p = jnp.asarray(w1, jnp.bfloat16)                          # (K, 128)
    b1_p = jnp.asarray(b1, jnp.float32).reshape(1, hidden)
    w2_p = jnp.zeros((hidden, n_pad), jnp.bfloat16)
    w2_p = w2_p.at[:, :output_size].set(jnp.asarray(w2, jnp.bfloat16))
    b2_p = jnp.full((1, n_pad), NEG_INF, jnp.float32)
    b2_p = b2_p.at[0, :output_size].set(jnp.asarray(b2, jnp.float32).reshape(-1))
    return w1_p, b1_p, w2_p, b2_p, output_size


def torch_model_forward(x, prepared, y=None):
    """Pallas implementation of TorchModel.forward (prepared = prepare_params(params))."""
    w1_p, b1_p, w2_p, b2_p, output_size = prepared
    if y is None:
        return _forward_probs(x, w1_p, b1_p, w2_p, b2_p, output_size=output_size)
    labels = y.reshape(-1).astype(jnp.int32)   # safe for batch == 1
    return _forward_loss(x, w1_p, b1_p, w2_p, b2_p, labels, output_size=output_size)


def init_params(key, input_size, output_size):
    k1, k2, k3, k4 = jax.random.split(key, 4)
    # Deterministic synthetic init (roughly PyTorch's uniform fan-in scaling).
    lim1 = 1.0 / jnp.sqrt(input_size)
    lim2 = 1.0 / jnp.sqrt(HIDDEN)
    w1 = jax.random.uniform(k1, (input_size, HIDDEN), jnp.float32, -lim1, lim1)
    b1 = jax.random.uniform(k2, (1, HIDDEN), jnp.float32, -lim1, lim1)
    w2 = jax.random.uniform(k3, (HIDDEN, output_size), jnp.float32, -lim2, lim2)
    b2 = jax.random.uniform(k4, (1, output_size), jnp.float32, -lim2, lim2)
    return w1, b1, w2, b2


def _reference_probs(x, params):
    w1, b1, w2, b2 = params
    h = jnp.maximum(x @ w1 + b1, 0.0)
    logits = h @ w2 + b2
    return jax.nn.softmax(logits, axis=1)


if __name__ == "__main__":
    key = jax.random.PRNGKey(0)
    kx, kp, ky = jax.random.split(key, 3)

    batch, input_size, output_size = 8, 32, 10
    x = jax.random.normal(kx, (batch, input_size), jnp.float32)
    params = init_params(kp, input_size, output_size)
    prepared = prepare_params(params)
    y = jax.random.randint(ky, (batch, 1), 0, output_size)

    # Inference path (y=None): softmax probabilities.
    y_pred = jax.block_until_ready(torch_model_forward(x, prepared))
    assert y_pred.shape == (batch, output_size)

    # Rows sum to ~1 (padded classes are exactly 0; bf16 output + approx rcp).
    assert jnp.allclose(jnp.sum(y_pred, axis=1), 1.0, atol=1e-2)

    # Matches the f32 pure-JAX reference within bf16-matmul tolerance.
    ref = _reference_probs(x, params)
    assert jnp.allclose(y_pred, ref, atol=5e-2), float(jnp.max(jnp.abs(y_pred - ref)))

    # Training path (with labels): scalar cross-entropy loss.
    loss = jax.block_until_ready(torch_model_forward(x, prepared, y))
    assert loss.shape == ()
    assert bool(jnp.isfinite(loss))

    print("KERNEL_OK")
</pallas_src>

<mosaic_0001>
module attributes {stable_mosaic.version = 11 : i64} {
  func.func @_mlp_softmax_kernel(%arg0: i32, %arg1: memref<8x32xf32, #tpu.memory_space<vmem>>, %arg2: memref<32x128xbf16, #tpu.memory_space<vmem>>, %arg3: memref<1x128xf32, #tpu.memory_space<vmem>>, %arg4: memref<128x128xbf16, #tpu.memory_space<vmem>>, %arg5: memref<1x128xf32, #tpu.memory_space<vmem>>, %arg6: memref<8x128xbf16, #tpu.memory_space<vmem>>) attributes {dimension_semantics = [#tpu.dimension_semantics<parallel>], iteration_bounds = array<i64: 1>, scalar_prefetch = 0 : i64, scratch_operands = 0 : i64, tpu.core_type = #tpu.core_type<tc>, window_params = [{transform_indices = @transform_0, window_bounds = array<i64: 8, 32>}, {pipeline_mode = #tpu.pipeline_mode<synchronous>, transform_indices = @transform_1, window_bounds = array<i64: 32, 128>}, {pipeline_mode = #tpu.pipeline_mode<synchronous>, transform_indices = @transform_2, window_bounds = array<i64: 1, 128>}, {pipeline_mode = #tpu.pipeline_mode<synchronous>, transform_indices = @transform_3, window_bounds = array<i64: 128, 128>}, {pipeline_mode = #tpu.pipeline_mode<synchronous>, transform_indices = @transform_4, window_bounds = array<i64: 1, 128>}, {transform_indices = @transform_5, window_bounds = array<i64: 8, 128>}]} {
    %c0 = arith.constant 0 : index
    %c0_0 = arith.constant 0 : index
    %0 = vector.load %arg1[%c0, %c0_0] : memref<8x32xf32, #tpu.memory_space<vmem>>, vector<8x32xf32>
    %1 = arith.truncf %0 : vector<8x32xf32> to vector<8x32xbf16>
    %c0_1 = arith.constant 0 : index
    %c0_2 = arith.constant 0 : index
    %2 = vector.load %arg2[%c0_1, %c0_2] : memref<32x128xbf16, #tpu.memory_space<vmem>>, vector<32x128xbf16>
    %cst = arith.constant dense<0.000000e+00> : vector<8x128xf32>
    %3 = tpu.matmul %1, %2, %cst {dimension_numbers = #tpu.dot_dimension_numbers<[1], [0], [0], [1], [0, 0, 1, 1], [], []>} : vector<8x32xbf16>, vector<32x128xbf16>, vector<8x128xf32> -> vector<8x128xf32>
    %c0_3 = arith.constant 0 : index
    %c0_4 = arith.constant 0 : index
    %4 = vector.load %arg3[%c0_3, %c0_4] : memref<1x128xf32, #tpu.memory_space<vmem>>, vector<1x128xf32>
    %5 = vector.broadcast %4 : vector<1x128xf32> to vector<8x128xf32>
    %6 = arith.addf %3, %5 : vector<8x128xf32>
    %cst_5 = arith.constant 0.000000e+00 : f32
    %7 = vector.broadcast %cst_5 : f32 to vector<8x128xf32>
    %8 = arith.maximumf %6, %7 : vector<8x128xf32>
    %9 = arith.truncf %8 : vector<8x128xf32> to vector<8x128xbf16>
    %c0_6 = arith.constant 0 : index
    %c0_7 = arith.constant 0 : index
    %10 = vector.load %arg4[%c0_6, %c0_7] : memref<128x128xbf16, #tpu.memory_space<vmem>>, vector<128x128xbf16>
    %cst_8 = arith.constant dense<0.000000e+00> : vector<8x128xf32>
    %11 = tpu.matmul %9, %10, %cst_8 {dimension_numbers = #tpu.dot_dimension_numbers<[1], [0], [0], [1], [0, 0, 1, 1], [], []>} : vector<8x128xbf16>, vector<128x128xbf16>, vector<8x128xf32> -> vector<8x128xf32>
    %c0_9 = arith.constant 0 : index
    %c0_10 = arith.constant 0 : index
    %12 = vector.load %arg5[%c0_9, %c0_10] : memref<1x128xf32, #tpu.memory_space<vmem>>, vector<1x128xf32>
    %13 = vector.broadcast %12 : vector<1x128xf32> to vector<8x128xf32>
    %14 = arith.addf %11, %13 : vector<8x128xf32>
    %cst_11 = arith.constant dense<0xFF800000> : vector<8xf32>
    %15 = vector.multi_reduction <maximumf>, %14, %cst_11 [1] : vector<8x128xf32> to vector<8xf32>
    %16 = vector.shape_cast %15 : vector<8xf32> to vector<8x1xf32>
    %17 = vector.broadcast %16 : vector<8x1xf32> to vector<8x128xf32>
    %18 = arith.subf %14, %17 : vector<8x128xf32>
    %19 = math.exp %18 : vector<8x128xf32>
    %cst_12 = arith.constant dense<0.000000e+00> : vector<8xf32>
    %20 = vector.multi_reduction <add>, %19, %cst_12 [1] : vector<8x128xf32> to vector<8xf32>
    %21 = vector.shape_cast %20 : vector<8xf32> to vector<8x1xf32>
    %22 = tpu.reciprocal %21 {approx = true} : vector<8x1xf32> -> vector<8x1xf32>
    %23 = vector.broadcast %22 : vector<8x1xf32> to vector<8x128xf32>
    %24 = arith.mulf %19, %23 : vector<8x128xf32>
    %25 = arith.truncf %24 : vector<8x128xf32> to vector<8x128xbf16>
    %c0_13 = arith.constant 0 : index
    %c0_14 = arith.constant 0 : index
    %26 = vector.load %arg6[%c0_13, %c0_14] : memref<8x128xbf16, #tpu.memory_space<vmem>>, vector<8x128xbf16>
    tpu.vector_store %arg6[%c0_13, %c0_14], %25 {strides = array<i32>} : memref<8x128xbf16, #tpu.memory_space<vmem>>, vector<8x128xbf16>,
    return
  }
  func.func @transform_0(%arg0: i32) -> (i32, i32) {
    %c0_i32 = arith.constant 0 : i32
    %c0_i32_0 = arith.constant 0 : i32
    return %arg0, %c0_i32 : i32, i32
  }
  func.func @transform_1(%arg0: i32) -> (i32, i32) {
    %c0_i32 = arith.constant 0 : i32
    %c0_i32_0 = arith.constant 0 : i32
    %c0_i32_1 = arith.constant 0 : i32
    return %c0_i32, %c0_i32_0 : i32, i32
  }
  func.func @transform_2(%arg0: i32) -> (i32, i32) {
    %c0_i32 = arith.constant 0 : i32
    %c0_i32_0 = arith.constant 0 : i32
    %c0_i32_1 = arith.constant 0 : i32
    return %c0_i32, %c0_i32_0 : i32, i32
  }
  func.func @transform_3(%arg0: i32) -> (i32, i32) {
    %c0_i32 = arith.constant 0 : i32
    %c0_i32_0 = arith.constant 0 : i32
    %c0_i32_1 = arith.constant 0 : i32
    return %c0_i32, %c0_i32_0 : i32, i32
  }
  func.func @transform_4(%arg0: i32) -> (i32, i32) {
    %c0_i32 = arith.constant 0 : i32
    %c0_i32_0 = arith.constant 0 : i32
    %c0_i32_1 = arith.constant 0 : i32
    return %c0_i32, %c0_i32_0 : i32, i32
  }
  func.func @transform_5(%arg0: i32) -> (i32, i32) {
    %c0_i32 = arith.constant 0 : i32
    %c0_i32_0 = arith.constant 0 : i32
    return %arg0, %c0_i32 : i32, i32
  }
}

</mosaic_0001>

<llo_original>
// kernel: _forward_probs.1
$region0: #{_forward_probs.1}
  #allocation0 [shape = 'u32[]', space=smem, size = 0x4, offset = 0x4, fixed_abs, tag = 'smem constant byte address 0x4 - core index']
  #allocation1 [shape = 'u32[144,128]{1,0:T(1,128)}', space=vmem, size = 0x12000, scoped, tag = 'internal scratch']
  %s0 = inlined_call_operand.hbm [shape: f32[8,32], index: 0, kind: input, shape index: {}]
  %s1 = inlined_call_operand.hbm [shape: bf16[32,128], index: 1, kind: input, shape index: {}]
  %s2 = inlined_call_operand.vmem [shape: f32[1,128], index: 2, kind: input, shape index: {}]
  %s3 = inlined_call_operand.hbm [shape: bf16[128,128], index: 3, kind: input, shape index: {}]
  %s4 = inlined_call_operand.vmem [shape: f32[1,128], index: 4, kind: input, shape index: {}]
  %s5 = inlined_call_operand.vmem [shape: bf16[8,128], index: 5, kind: output, shape index: {}]
  %s6 = sld [smem:[#allocation0]]
  $region42: #{_forward_probs.1} parent=0
    _
  %s8 = ssub.s32 1, %s6
  %s9 = scalar_select 0, %s8, %s6
  $region1: #{_forward_probs.1} parent=0
    #allocation2 [shape = 'u8[4096]{0}', space=vmem, size = 0x1000, scoped, tag = 'input window, operand 0, single buffered']
    #allocation3 [shape = 's32[1]{0}', space=sflag, size = 0x4, scoped, tag = 'scoped memory for _forward_probs.1']
    #allocation4 [shape = 'u8[8192]{0}', space=vmem, size = 0x2000, scoped, tag = 'input window, operand 1, single buffered']
    #allocation5 [shape = 's32[1]{0}', space=sflag, size = 0x4, scoped, tag = 'scoped memory for _forward_probs.1']
    #allocation6 [shape = 'u8[32768]{0}', space=vmem, size = 0x8000, scoped, tag = 'input window, operand 3, single buffered']
    %10 = vsyncpa [#allocation3], 0
    %11 = vsyncpa [#allocation5], 0
    // Predicated region
    $region2: #{_forward_probs.1} parent=1 // pred_check
      _
    $region3: #{_forward_probs.1} parent=1 // pred_check_branch
      %13 = sbr.rel (0) target = $region5
    $region4: #{_forward_probs.1} parent=1 // pred_region
      %s15 = ssub.s32 128, 128
      %16 = vsyncadd [#allocation3], %s15
      %s18 = sshll.u32 [#allocation2], 4
      %s19 = int_to_ptr.vmem [resolvable:$true] %s18
      %21 = dma.hbm_to_vmem [thread:$0]  %s0, 128, %s19, [#allocation3]
    $region5: #{_forward_probs.1} parent=1 // pred_fallthru
      _
    // Predicated region
    $region6: #{_forward_probs.1} parent=1 // pred_check
      _
    $region7: #{_forward_probs.1} parent=1 // pred_check_branch
      %23 = sbr.rel (0) target = $region9
    $region8: #{_forward_probs.1} parent=1 // pred_region
      %s25 = ssub.s32 256, 256
      %26 = vsyncadd [#allocation5], %s25
      %s27 = sshll.u32 [#allocation4], 4
      %s28 = int_to_ptr.vmem [resolvable:$true] %s27
      %33 = dma.hbm_to_vmem [thread:$0]  %s1, 256, %s28, [#allocation5], 64, 64, 4
    $region9: #{_forward_probs.1} parent=1 // pred_fallthru
      _
    // Predicated region
    $region10: #{_forward_probs.1} parent=1 // pred_check
      _
    $region11: #{_forward_probs.1} parent=1 // pred_check_branch
      %35 = sbr.rel (0) target = $region13
    $region12: #{_forward_probs.1} parent=1 // pred_region
      _
    $region13: #{_forward_probs.1} parent=1 // pred_fallthru
      _
    // Predicated region
    $region14: #{_forward_probs.1} parent=1 // pred_check
      _
    $region15: #{_forward_probs.1} parent=1 // pred_check_branch
      %37 = sbr.rel (0) target = $region17
    $region16: #{_forward_probs.1} parent=1 // pred_region
      %s39 = ssub.s32 1024, 1024
      %40 = vsyncadd [#allocation5], %s39
      %s41 = sshll.u32 [#allocation6], 4
      %s42 = int_to_ptr.vmem [resolvable:$true] %s41
      %47 = dma.hbm_to_vmem [thread:$0]  %s3, 1024, %s42, [#allocation5], 64, 64, 4
    $region17: #{_forward_probs.1} parent=1 // pred_fallthru
      _
    // Predicated region
    $region18: #{_forward_probs.1} parent=1 // pred_check
      _
    $region19: #{_forward_probs.1} parent=1 // pred_check_branch
      %49 = sbr.rel (0) target = $region21
    $region20: #{_forward_probs.1} parent=1 // pred_region
      _
    $region21: #{_forward_probs.1} parent=1 // pred_fallthru
      _
    // Predicated region
    $region22: #{_forward_probs.1} parent=1 // pred_check
      _
    $region23: #{_forward_probs.1} parent=1 // pred_check_branch
      %51 = sbr.rel (0) target = $region25
    $region24: #{_forward_probs.1} parent=1 // pred_region
      %52 = dma.done [#allocation3], 128
    $region25: #{_forward_probs.1} parent=1 // pred_fallthru
      _
    // Predicated region
    $region26: #{_forward_probs.1} parent=1 // pred_check
      _
    $region27: #{_forward_probs.1} parent=1 // pred_check_branch
      %54 = sbr.rel (0) target = $region29
    $region28: #{_forward_probs.1} parent=1 // pred_region
      %55 = dma.done [#allocation5], 256
    $region29: #{_forward_probs.1} parent=1 // pred_fallthru
      _
    // Predicated region
    $region30: #{_forward_probs.1} parent=1 // pred_check
      _
    $region31: #{_forward_probs.1} parent=1 // pred_check_branch
      %57 = sbr.rel (0) target = $region33
    $region32: #{_forward_probs.1} parent=1 // pred_region
      %58 = dma.done [#allocation5], 1024
    $region33: #{_forward_probs.1} parent=1 // pred_fallthru
      _
    %v60 = vld [vmem:[#allocation2] sm:$0xff]
    %v61 = vpack.c.bf16 %v60, %v60
    %v62 = vld [vmem:[#allocation4] sm:$0xf]
    %v63 = vld [vmem:[#allocation4 + $0x4] sm:$0xf]
    %v64 = vld [vmem:[#allocation4 + $0x8] sm:$0xf]
    %v65 = vld [vmem:[#allocation4 + $0xc] sm:$0xf]
    %v66 = vld [vmem:[%s2] sm:$0x1]
    %v68 = vlaneseq
    %v69 = vshrl.u32 %v68, 7
    %v70 = vsub.s32 0, %v69
    %v71 = vrot.slane %v66, %v70
    %v77 = vunpack.c.l.b16 %v62
    %v78 = vunpack.c.l.b16 %v63
    %v79 = vunpack.c.l.b16 %v64
    %v80 = vunpack.c.l.b16 %v65
    %v81 = vpack.c.b16 %v78, %v77
    %v82 = vpack.c.b16 %v80, %v79
    %vm85 = vcmask 261120
    %v87 = vsel %vm85, %v61, 0
    %89 = vmatprep.subr.bf16.mxu0 0
    %90 = vmatpush1.bf16.msra.mxu0 %v81
    %91 = vmatprep.subr.bf16.mxu0 0
    %92 = vmatpush1.bf16.msra.mxu0 %v82
    %93 = vmatprep.subr.bf16.mxu0 0
    %94 = vmatpush1.bf16.msra.mxu0 0
    %95 = vmatprep.subr.bf16.mxu0 0
    %96 = vmatpush1.bf16.msra.mxu0 0
    %97 = vmatprep.subr.bf16.mxu0 0
    %98 = vmatpush1.bf16.msra.mxu0 0
    %99 = vmatprep.subr.bf16.mxu0 0
    %100 = vmatpush1.bf16.msra.mxu0 0
    %101 = vmatprep.subr.bf16.mxu0 0
    %102 = vmatpush1.bf16.msra.mxu0 0
    %103 = vmatprep.subr.bf16.mxu0 0
    %104 = vmatpush1.bf16.msra.mxu0 0
    %105 = vmatprep.subr.bf16.mxu0 0
    %106 = vmatpush1.bf16.msra.mxu0 0
    %107 = vmatprep.subr.bf16.mxu0 0
    %108 = vmatpush1.bf16.msra.mxu0 0
    %109 = vmatprep.subr.bf16.mxu0 0
    %110 = vmatpush1.bf16.msra.mxu0 0
    %111 = vmatprep.subr.bf16.mxu0 0
    %112 = vmatpush1.bf16.msra.mxu0 0
    %113 = vmatprep.subr.bf16.mxu0 0
    %114 = vmatpush1.bf16.msra.mxu0 0
    %115 = vmatprep.subr.bf16.mxu0 0
    %116 = vmatpush1.bf16.msra.mxu0 0
    %117 = vmatprep.subr.bf16.mxu0 0
    %118 = vmatpush1.bf16.msra.mxu0 0
    %119 = vmatprep.subr.bf16.mxu0 0
    %120 = vmatpush1.bf16.msra.mxu0 0
    %121 = vmatprep.mubr.bf16.mxu0 0
    %122 = vmatmul.mubr.bf16.gmra.mrb[0].mxu0 %v87
    %v123 = vpop.f32.mrb[0].mxu0
    %v124 = vadd.f32 %v71, %v123
    %v125 = vpop.f32.mrb[0].mxu0
    %v126 = vpop.f32.mrb[0].mxu0
    %v127 = vpop.f32.mrb[0].mxu0
    %128 = vdwg.mxu0
    %v129 = vmax.f32 %v124, 0.0
    %v130 = vpack.c.bf16 %v129, %v129
    %v131 = vld [vmem:[#allocation6] sm:$0xf]
    %v132 = vld [vmem:[#allocation6 + $0x4] sm:$0xf]
    %v133 = vld [vmem:[#allocation6 + $0x8] sm:$0xf]
    %v134 = vld [vmem:[#allocation6 + $0xc] sm:$0xf]
    %v135 = vld [vmem:[#allocation6 + $0x10] sm:$0xf]
    %v136 = vld [vmem:[#allocation6 + $0x14] sm:$0xf]
    %v137 = vld [vmem:[#allocation6 + $0x18] sm:$0xf]
    %v138 = vld [vmem:[#allocation6 + $0x1c] sm:$0xf]
    %v139 = vld [vmem:[#allocation6 + $0x20] sm:$0xf]
    %v140 = vld [vmem:[#allocation6 + $0x24] sm:$0xf]
    %v141 = vld [vmem:[#allocation6 + $0x28] sm:$0xf]
    %v142 = vld [vmem:[#allocation6 + $0x2c] sm:$0xf]
    %v143 = vld [vmem:[#allocation6 + $0x30] sm:$0xf]
    %v144 = vld [vmem:[#allocation6 + $0x34] sm:$0xf]
    %v145 = vld [vmem:[#allocation6 + $0x38] sm:$0xf]
    %v146 = vld [vmem:[#allocation6 + $0x3c] sm:$0xf]
    %v147 = vld [vmem:[%s4] sm:$0x1]
    %v149 = vlaneseq
    %v150 = vshrl.u32 %v149, 7
    %v151 = vsub.s32 0, %v150
    %v152 = vrot.slane %v147, %v151
    %v170 = vunpack.c.l.b16 %v131
    %v171 = vunpack.c.l.b16 %v132
    %v172 = vunpack.c.l.b16 %v133
    %v173 = vunpack.c.l.b16 %v134
    %v174 = vunpack.c.l.b16 %v135
    %v175 = vunpack.c.l.b16 %v136
    %v176 = vunpack.c.l.b16 %v137
    %v177 = vunpack.c.l.b16 %v138
    %v178 = vunpack.c.l.b16 %v139
    %v179 = vunpack.c.l.b16 %v140
    %v180 = vunpack.c.l.b16 %v141
    %v181 = vunpack.c.l.b16 %v142
    %v182 = vunpack.c.l.b16 %v143
    %v183 = vunpack.c.l.b16 %v144
    %v184 = vunpack.c.l.b16 %v145
    %v185 = vunpack.c.l.b16 %v146
    %v186 = vpack.c.b16 %v171, %v170
    %v187 = vpack.c.b16 %v173, %v172
    %v188 = vpack.c.b16 %v175, %v174
    %v189 = vpack.c.b16 %v177, %v176
    %v190 = vpack.c.b16 %v179, %v178
    %v191 = vpack.c.b16 %v181, %v180
    %v192 = vpack.c.b16 %v183, %v182
    %v193 = vpack.c.b16 %v185, %v184
    %202 = vmatprep.subr.bf16.mxu0 0
    %203 = vmatpush1.bf16.msra.mxu0 %v186
    %204 = vmatprep.subr.bf16.mxu0 0
    %205 = vmatpush1.bf16.msra.mxu0 %v187
    %206 = vmatprep.subr.bf16.mxu0 0
    %207 = vmatpush1.bf16.msra.mxu0 %v188
    %208 = vmatprep.subr.bf16.mxu0 0
    %209 = vmatpush1.bf16.msra.mxu0 %v189
    %210 = vmatprep.subr.bf16.mxu0 0
    %211 = vmatpush1.bf16.msra.mxu0 %v190
    %212 = vmatprep.subr.bf16.mxu0 0
    %213 = vmatpush1.bf16.msra.mxu0 %v191
    %214 = vmatprep.subr.bf16.mxu0 0
    %215 = vmatpush1.bf16.msra.mxu0 %v192
    %216 = vmatprep.subr.bf16.mxu0 0
    %217 = vmatpush1.bf16.msra.mxu0 %v193
    %218 = vmatprep.subr.bf16.mxu0 0
    %219 = vmatpush1.bf16.msra.mxu0 0
    %220 = vmatprep.subr.bf16.mxu0 0
    %221 = vmatpush1.bf16.msra.mxu0 0
    %222 = vmatprep.subr.bf16.mxu0 0
    %223 = vmatpush1.bf16.msra.mxu0 0
    %224 = vmatprep.subr.bf16.mxu0 0
    %225 = vmatpush1.bf16.msra.mxu0 0
    %226 = vmatprep.subr.bf16.mxu0 0
    %227 = vmatpush1.bf16.msra.mxu0 0
    %228 = vmatprep.subr.bf16.mxu0 0
    %229 = vmatpush1.bf16.msra.mxu0 0
    %230 = vmatprep.subr.bf16.mxu0 0
    %231 = vmatpush1.bf16.msra.mxu0 0
    %232 = vmatprep.subr.bf16.mxu0 0
    %233 = vmatpush1.bf16.msra.mxu0 0
    %234 = vmatprep.mubr.bf16.mxu0 0
    %235 = vmatmul.mubr.bf16.gmra.mrb[0].mxu0 %v130
    %v236 = vpop.f32.mrb[0].mxu0
    %v237 = vadd.f32 %v152, %v236
    %v238 = vpop.f32.mrb[0].mxu0
    %v239 = vpop.f32.mrb[0].mxu0
    %v240 = vpop.f32.mrb[0].mxu0
    %241 = vdwg.mxu0
    %242 = vmax.xlane.f32.xlu0 %v237
    %v243 = vpop.xlane.xlu0 %242
    %v244 = vsub.f32 %v237, %v243
    %v245 = vmul.f32 %v244, 1.442695
    %v246 = vpow.pop %v245
    %247 = vadd.xlane.f32.xlu0 %v246
    %v248 = vpop.xlane.xlu0 %247
    %v249 = vrcp.pop %v248
    %v250 = vmul.f32 %v246, %v249
    %v251 = vpack.c.bf16 %v250, %v250
    %252 = vst [vmem:[%s5] sm:$0xf] %v251
    // Predicated region
    $region34: #{_forward_probs.1} parent=1 // pred_check
      _
    $region35: #{_forward_probs.1} parent=1 // pred_check_branch
      %254 = sbr.rel (0) target = $region37
    $region36: #{_forward_probs.1} parent=1 // pred_region
      _
    $region37: #{_forward_probs.1} parent=1 // pred_fallthru
      _
    // Predicated region
    $region38: #{_forward_probs.1} parent=1 // pred_check
      _
    $region39: #{_forward_probs.1} parent=1 // pred_check_branch
      %256 = sbr.rel (0) target = $region41
    $region40: #{_forward_probs.1} parent=1 // pred_region
      _
    $region41: #{_forward_probs.1} parent=1 // pred_fallthru
      _
    %257 = vsyncpa [#allocation3], 1
    %258 = vsyncpa [#allocation5], 1

</llo_original>
